<compile_context>
chip_gen: v7x
topology: tpu7x:2x2x1
jax: 0.10.0
libtpu: 0.0.40
codegen_flags: <defaults>
</compile_context>

<pallas_src>
import jax
import jax.numpy as jnp
from jax.experimental import pallas as pl
from jax.experimental.pallas import tpu as pltpu

LANES = 128
SUBLANES = 8
DEFAULT_TILE_ROWS = 1024  # 1024 * 128 * 4 B = 512 KiB per f32 tile


def _make_loss_kernel(tile_rows, acc_rows, rows, tiles_per_split, needs_mask):
    def kernel(x_ref, y_ref, o_ref):
        j = pl.program_id(1)

        x = x_ref[...].astype(jnp.float32)
        y = y_ref[...].astype(jnp.float32)
        d = (x - y) * (y * 3.0 + 1.0)
        d2 = d * d

        if needs_mask:
            # Zero out rows past the real extent (edge tile / phantom tile).
            split = pl.program_id(0)
            logical_tile = split * tiles_per_split + j
            row0 = logical_tile * tile_rows
            row_ids = row0 + jax.lax.broadcasted_iota(
                jnp.int32, (tile_rows, LANES), 0)
            d2 = jnp.where(row_ids < rows, d2, 0.0)

        if acc_rows == SUBLANES:
            # Fold the tile down to one (8, 128) vreg with pure VPU adds
            # (reshape keeps (8,128) tiles intact -> free).
            partial = d2.reshape(tile_rows // SUBLANES, SUBLANES, LANES).sum(axis=0)
        else:
            # Tiny-input fallback (rows < 8 or not a multiple of 8): a single
            # grid step covers the whole array; one sublane reduce is fine.
            partial = jnp.sum(d2, axis=0, keepdims=True)

        # Output block is the accumulator (resident across the reduction axis).
        @pl.when(j == 0)
        def _():
            o_ref[...] = partial

        @pl.when(j > 0)
        def _():
            o_ref[...] += partial

    return kernel


def my_loss(x: jax.Array, y: jax.Array) -> jax.Array:
    """Pallas equivalent of My_loss().forward(x, y). Returns a scalar f32."""
    assert x.shape == y.shape, "x and y must have the same shape"
    total_n = x.size
    assert total_n > 0

    fx = x.reshape(-1)
    fy = y.reshape(-1)
    # Rare fallback: if the element count is not lane-aligned, zero-pad to a
    # multiple of 128 so the [rows, 128] reshape is possible.  Zero padding
    # contributes exactly 0 to the sum ((0 - 0) * (0*3 + 1) = 0).  Typical
    # NCHW sizes (H*W a multiple of 128) never hit this copy.
    if total_n % LANES != 0:
        pad = LANES - (total_n % LANES)
        fx = jnp.pad(fx, (0, pad))
        fy = jnp.pad(fy, (0, pad))
    rows = fx.size // LANES
    x2 = fx.reshape(rows, LANES)
    y2 = fy.reshape(rows, LANES)

    # Row-tile size: large streaming tiles when there is enough data,
    # otherwise a single full-array block.
    tile_rows = DEFAULT_TILE_ROWS if rows >= DEFAULT_TILE_ROWS else rows
    acc_rows = SUBLANES if tile_rows % SUBLANES == 0 else 1

    tiles_total = -(-rows // tile_rows)
    # Leading "parallel" axis lets v7x shard the row range across its 2
    # TensorCores; on single-TC chips it is just a serial outer loop.
    num_splits = 2 if tiles_total >= 2 else 1
    tiles_per_split = -(-tiles_total // num_splits)
    needs_mask = (rows % tile_rows != 0) or (tiles_total % num_splits != 0)

    def in_index_map(i, j):
        # Clamp phantom tiles (uneven split) onto a valid block; their
        # contribution is zeroed by the in-kernel row mask.
        return (jnp.minimum(i * tiles_per_split + j, tiles_total - 1), 0)

    kernel = _make_loss_kernel(tile_rows, acc_rows, rows, tiles_per_split,
                               needs_mask)

    bytes_accessed = (x2.size * x2.dtype.itemsize
                      + y2.size * y2.dtype.itemsize
                      + num_splits * acc_rows * LANES * 4)

    partials = pl.pallas_call(
        kernel,
        out_shape=jax.ShapeDtypeStruct((num_splits * acc_rows, LANES),
                                       jnp.float32),
        grid_spec=pltpu.PrefetchScalarGridSpec(
            num_scalar_prefetch=0,
            grid=(num_splits, tiles_per_split),
            in_specs=[
                pl.BlockSpec((tile_rows, LANES), in_index_map),
                pl.BlockSpec((tile_rows, LANES), in_index_map),
            ],
            out_specs=pl.BlockSpec((acc_rows, LANES), lambda i, j: (i, 0)),
        ),
        compiler_params=pltpu.CompilerParams(
            dimension_semantics=("parallel", "arbitrary"),
        ),
        cost_estimate=pl.CostEstimate(
            flops=6 * total_n,
            transcendentals=0,
            bytes_accessed=bytes_accessed,
        ),
    )(x2, y2)

    # Final cross-lane reduce + mean over at most 2*8*128 floats: negligible.
    return jnp.sum(partials) * (1.0 / float(total_n))


def my_loss_ref(x, y):
    """Pure-JAX reference for verification."""
    x = x.astype(jnp.float32)
    y = y.astype(jnp.float32)
    return jnp.mean(jnp.square((x - y) * (y * 3.0 + 1.0)))


if __name__ == "__main__":
    key = jax.random.PRNGKey(0)

    # Primary check: small NCHW shapes consistent with a reconstruction loss.
    kx, ky = jax.random.split(key)
    x = jax.random.normal(kx, (2, 4, 16, 16), dtype=jnp.float32)
    y = jax.random.normal(ky, (2, 4, 16, 16), dtype=jnp.float32)
    out = jax.block_until_ready(my_loss(x, y))
    ref = my_loss_ref(x, y)
    assert jnp.allclose(out, ref, rtol=1e-5, atol=1e-6), (out, ref)

    # Extra checks: exercise the multi-tile / 2-split / masked-edge-tile paths.
    for shape in [(2, 10, 100, 100), (4, 16, 64, 64)]:
        kx, ky, key = jax.random.split(key, 3)
        xa = jax.random.normal(kx, shape, dtype=jnp.float32)
        ya = jax.random.normal(ky, shape, dtype=jnp.float32)
        got = jax.block_until_ready(my_loss(xa, ya))
        want = my_loss_ref(xa, ya)
        assert jnp.allclose(got, want, rtol=1e-5, atol=1e-5), (shape, got, want)

    print("KERNEL_OK")
</pallas_src>

<mosaic_0001>
module attributes {stable_mosaic.version = 11 : i64} {
  func.func @kernel(%arg0: i32, %arg1: i32, %arg2: memref<16x128xf32, #tpu.memory_space<vmem>>, %arg3: memref<16x128xf32, #tpu.memory_space<vmem>>, %arg4: memref<8x128xf32, #tpu.memory_space<vmem>>) attributes {dimension_semantics = [#tpu.dimension_semantics<parallel>, #tpu.dimension_semantics<arbitrary>], iteration_bounds = array<i64: 1, 1>, scalar_prefetch = 0 : i64, scratch_operands = 0 : i64, tpu.core_type = #tpu.core_type<tc>, window_params = [{transform_indices = @transform_0, window_bounds = array<i64: 16, 128>}, {transform_indices = @transform_1, window_bounds = array<i64: 16, 128>}, {transform_indices = @transform_2, window_bounds = array<i64: 8, 128>}]} {
    %c0 = arith.constant 0 : index
    %c0_0 = arith.constant 0 : index
    %0 = vector.load %arg2[%c0, %c0_0] : memref<16x128xf32, #tpu.memory_space<vmem>>, vector<16x128xf32>
    %c0_1 = arith.constant 0 : index
    %c0_2 = arith.constant 0 : index
    %1 = vector.load %arg3[%c0_1, %c0_2] : memref<16x128xf32, #tpu.memory_space<vmem>>, vector<16x128xf32>
    %2 = arith.subf %0, %1 : vector<16x128xf32>
    %cst = arith.constant 3.000000e+00 : f32
    %3 = vector.broadcast %cst : f32 to vector<16x128xf32>
    %4 = arith.mulf %1, %3 : vector<16x128xf32>
    %cst_3 = arith.constant 1.000000e+00 : f32
    %5 = vector.broadcast %cst_3 : f32 to vector<16x128xf32>
    %6 = arith.addf %4, %5 : vector<16x128xf32>
    %7 = arith.mulf %2, %6 : vector<16x128xf32>
    %8 = arith.mulf %7, %7 : vector<16x128xf32>
    %9 = vector.shape_cast %8 : vector<16x128xf32> to vector<2x8x128xf32>
    %cst_4 = arith.constant dense<0.000000e+00> : vector<8x128xf32>
    %10 = vector.multi_reduction <add>, %9, %cst_4 [0] : vector<2x8x128xf32> to vector<8x128xf32>
    %c0_i32 = arith.constant 0 : i32
    %11 = arith.cmpi eq, %arg1, %c0_i32 : i32
    %12 = arith.extui %11 : i1 to i32
    %c0_i32_5 = arith.constant 0 : i32
    %13 = arith.cmpi ne, %12, %c0_i32_5 : i32
    scf.if %13 {
      %c0_8 = arith.constant 0 : index
      %c0_9 = arith.constant 0 : index
      %17 = vector.load %arg4[%c0_8, %c0_9] : memref<8x128xf32, #tpu.memory_space<vmem>>, vector<8x128xf32>
      tpu.vector_store %arg4[%c0_8, %c0_9], %10 {strides = array<i32>} : memref<8x128xf32, #tpu.memory_space<vmem>>, vector<8x128xf32>,
    } else {
    }
    %c0_i32_6 = arith.constant 0 : i32
    %14 = arith.cmpi sgt, %arg1, %c0_i32_6 : i32
    %15 = arith.extui %14 : i1 to i32
    %c0_i32_7 = arith.constant 0 : i32
    %16 = arith.cmpi ne, %15, %c0_i32_7 : i32
    scf.if %16 {
      %c0_8 = arith.constant 0 : index
      %c0_9 = arith.constant 0 : index
      %17 = vector.load %arg4[%c0_8, %c0_9] : memref<8x128xf32, #tpu.memory_space<vmem>>, vector<8x128xf32>
      %18 = arith.addf %17, %10 : vector<8x128xf32>
      %c0_10 = arith.constant 0 : index
      %c0_11 = arith.constant 0 : index
      %19 = vector.load %arg4[%c0_10, %c0_11] : memref<8x128xf32, #tpu.memory_space<vmem>>, vector<8x128xf32>
      tpu.vector_store %arg4[%c0_10, %c0_11], %18 {strides = array<i32>} : memref<8x128xf32, #tpu.memory_space<vmem>>, vector<8x128xf32>,
    } else {
    }
    return
  }
  func.func @transform_0(%arg0: i32, %arg1: i32) -> (i32, i32) {
    %c1_i32 = arith.constant 1 : i32
    %0 = arith.muli %arg0, %c1_i32 : i32
    %1 = arith.addi %0, %arg1 : i32
    %c0_i32 = arith.constant 0 : i32
    %2 = arith.minsi %1, %c0_i32 : i32
    %c0_i32_0 = arith.constant 0 : i32
    %c0_i32_1 = arith.constant 0 : i32
    return %2, %c0_i32_0 : i32, i32
  }
  func.func @transform_1(%arg0: i32, %arg1: i32) -> (i32, i32) {
    %c1_i32 = arith.constant 1 : i32
    %0 = arith.muli %arg0, %c1_i32 : i32
    %1 = arith.addi %0, %arg1 : i32
    %c0_i32 = arith.constant 0 : i32
    %2 = arith.minsi %1, %c0_i32 : i32
    %c0_i32_0 = arith.constant 0 : i32
    %c0_i32_1 = arith.constant 0 : i32
    return %2, %c0_i32_0 : i32, i32
  }
  func.func @transform_2(%arg0: i32, %arg1: i32) -> (i32, i32) {
    %c0_i32 = arith.constant 0 : i32
    %c0_i32_0 = arith.constant 0 : i32
    return %arg0, %c0_i32 : i32, i32
  }
}

</mosaic_0001>

<llo_original>
// kernel: tpu_custom_call.1
$region0: #{tpu_custom_call.1}
  #allocation0 [shape = 'u32[]', space=smem, size = 0x4, offset = 0x4, fixed_abs, tag = 'smem constant byte address 0x4 - core index']
  #allocation1 [shape = 'u32[144,128]{1,0:T(1,128)}', space=vmem, size = 0x12000, scoped, tag = 'internal scratch']
  %s0 = inlined_call_operand.hbm [shape: f32[16,128], index: 0, kind: input, shape index: {}]
  %s1 = inlined_call_operand.hbm [shape: f32[16,128], index: 1, kind: input, shape index: {}]
  %s2 = inlined_call_operand.hbm [shape: f32[8,128], index: 2, kind: output, shape index: {}]
  %s3 = sld [smem:[#allocation0]]
  $region34: #{tpu_custom_call.1} parent=0
    _
  %s5 = ssub.s32 1, %s3
  %s6 = scalar_select 0, %s5, %s3
  $region1: #{tpu_custom_call.1} parent=0
    #allocation2 [shape = 'u8[8192]{0}', space=vmem, size = 0x2000, scoped, tag = 'input window, operand 0, single buffered']
    #allocation3 [shape = 's32[1]{0}', space=sflag, size = 0x4, scoped, tag = 'scoped memory for tpu_custom_call.1']
    #allocation4 [shape = 's32[1]{0}', space=sflag, size = 0x4, scoped, tag = 'scoped memory for tpu_custom_call.1']
    #allocation5 [shape = 'u8[8192]{0}', space=vmem, size = 0x2000, scoped, tag = 'input window, operand 1, single buffered']
    #allocation6 [shape = 's32[1]{0}', space=sflag, size = 0x4, scoped, tag = 'scoped memory for tpu_custom_call.1']
    #allocation7 [shape = 'u8[4096]{0}', space=vmem, size = 0x1000, scoped, tag = 'output window, operand 0, single buffered']
    %7 = vsyncpa [#allocation3], 0
    %8 = vsyncpa [#allocation6], 0
    %9 = vsyncpa [#allocation4], 0
    // Predicated region
    $region2: #{tpu_custom_call.1} parent=1 // pred_check
      _
    $region3: #{tpu_custom_call.1} parent=1 // pred_check_branch
      %11 = sbr.rel (0) target = $region5
    $region4: #{tpu_custom_call.1} parent=1 // pred_region
      %s12 = sadd.s32 0, 0
      %p13 = scmp.lt.s32.totalorder %s12, 0
      %s14 = scalar_select %p13, %s12, 0
      %s15 = smul.u32 2, %s14
      %s17 = ssub.s32 256, 256
      %18 = vsyncadd [#allocation3], %s17
      %s19 = smul.addr %s15, 128
      %s20 = scalar_lea.hbm %s0, %s19
      %s21 = sshll.u32 [#allocation2], 4
      %s22 = int_to_ptr.vmem [resolvable:$true] %s21
      %27 = dma.hbm_to_vmem [thread:$0]  %s20, 256, %s22, [#allocation3], 128, 128, 8
    $region5: #{tpu_custom_call.1} parent=1 // pred_fallthru
      _
    // Predicated region
    $region6: #{tpu_custom_call.1} parent=1 // pred_check
      _
    $region7: #{tpu_custom_call.1} parent=1 // pred_check_branch
      %29 = sbr.rel (0) target = $region9
    $region8: #{tpu_custom_call.1} parent=1 // pred_region
      %s30 = sadd.s32 0, 0
      %p31 = scmp.lt.s32.totalorder %s30, 0
      %s32 = scalar_select %p31, %s30, 0
      %s33 = smul.u32 2, %s32
      %s35 = ssub.s32 256, 256
      %36 = vsyncadd [#allocation6], %s35
      %s37 = smul.addr %s33, 128
      %s38 = scalar_lea.hbm %s1, %s37
      %s39 = sshll.u32 [#allocation5], 4
      %s40 = int_to_ptr.vmem [resolvable:$true] %s39
      %45 = dma.hbm_to_vmem [thread:$0]  %s38, 256, %s40, [#allocation6], 128, 128, 8
    $region9: #{tpu_custom_call.1} parent=1 // pred_fallthru
      _
    // Predicated region
    $region10: #{tpu_custom_call.1} parent=1 // pred_check
      _
    $region11: #{tpu_custom_call.1} parent=1 // pred_check_branch
      %47 = sbr.rel (0) target = $region13
    $region12: #{tpu_custom_call.1} parent=1 // pred_region
      %48 = dma.done [#allocation3], 256
    $region13: #{tpu_custom_call.1} parent=1 // pred_fallthru
      _
    // Predicated region
    $region14: #{tpu_custom_call.1} parent=1 // pred_check
      _
    $region15: #{tpu_custom_call.1} parent=1 // pred_check_branch
      %50 = sbr.rel (0) target = $region17
    $region16: #{tpu_custom_call.1} parent=1 // pred_region
      %51 = dma.done [#allocation6], 256
    $region17: #{tpu_custom_call.1} parent=1 // pred_fallthru
      _
    %s52 = sadd.s32 0, 0
    %p53 = scmp.lt.s32.totalorder %s52, 0
    %s54 = scalar_select %p53, %s52, 0
    %s55 = smul.u32 2, %s54
    %s56 = sadd.s32 0, 0
    %p57 = scmp.lt.s32.totalorder %s56, 0
    %s58 = scalar_select %p57, %s56, 0
    %s59 = smul.u32 2, %s58
    %v60 = vld [vmem:[#allocation2] sm:$0xff]
    %v61 = vld [vmem:[#allocation2 + $0x8] sm:$0xff]
    %v62 = vld [vmem:[#allocation5] sm:$0xff]
    %v63 = vld [vmem:[#allocation5 + $0x8] sm:$0xff]
    %v64 = vsub.f32 %v60, %v62
    %v65 = vsub.f32 %v61, %v63
    %v66 = vmul.f32 %v62, 3.0
    %v67 = vmul.f32 %v63, 3.0
    %v68 = vadd.f32 %v66, 1.0
    %v69 = vadd.f32 %v67, 1.0
    %v70 = vmul.f32 %v64, %v68
    %v71 = vmul.f32 %v65, %v69
    %v72 = vmul.f32 %v70, %v70
    %v73 = vmul.f32 %v71, %v71
    %v74 = vadd.f32 %v72, %v73
    %p75 = scmp.eq.s32.totalorder 0, 0
    // Predicated region
    $region18: #{tpu_custom_call.1} parent=1 // pred_check
      %p76 = pneg %p75
    $region19: #{tpu_custom_call.1} parent=1 // pred_check_branch
      %78 = sbr.rel (%p76) target = $region21
    $region20: #{tpu_custom_call.1} parent=1 // pred_region
      %79 = vst [vmem:[#allocation7] sm:$0xff] %v74
    $region21: #{tpu_custom_call.1} parent=1 // pred_fallthru
      _
    %p80 = scmp.gt.s32.totalorder 0, 0
    // Predicated region
    $region22: #{tpu_custom_call.1} parent=1 // pred_check
      %p81 = pneg %p80
    $region23: #{tpu_custom_call.1} parent=1 // pred_check_branch
      %83 = sbr.rel (%p81) target = $region25
    $region24: #{tpu_custom_call.1} parent=1 // pred_region
      %v84 = vld [vmem:[#allocation7] sm:$0xff]
      %v85 = vadd.f32 %v84, %v74
      %86 = vst [vmem:[#allocation7] sm:$0xff] %v85
    $region25: #{tpu_custom_call.1} parent=1 // pred_fallthru
      _
    // Predicated region
    $region26: #{tpu_custom_call.1} parent=1 // pred_check
      _
    $region27: #{tpu_custom_call.1} parent=1 // pred_check_branch
      %88 = sbr.rel (0) target = $region29
    $region28: #{tpu_custom_call.1} parent=1 // pred_region
      %s90 = ssub.s32 128, 128
      %91 = vsyncadd [#allocation4], %s90
      %s93 = sshll.u32 [#allocation7], 4
      %s94 = int_to_ptr.vmem [resolvable:$true] %s93
      %96 = dma.vmem_to_hbm [thread:$0]  %s94, 128, %s2, [#allocation4]
    $region29: #{tpu_custom_call.1} parent=1 // pred_fallthru
      _
    // Predicated region
    $region30: #{tpu_custom_call.1} parent=1 // pred_check
      _
    $region31: #{tpu_custom_call.1} parent=1 // pred_check_branch
      %98 = sbr.rel (0) target = $region33
    $region32: #{tpu_custom_call.1} parent=1 // pred_region
      %99 = dma.done [#allocation4], 128
    $region33: #{tpu_custom_call.1} parent=1 // pred_fallthru
      _
    %100 = vsyncpa [#allocation3], 1
    %101 = vsyncpa [#allocation6], 1
    %102 = vsyncpa [#allocation4], 1

</llo_original>
